<compile_context>
chip_gen: v7x
topology: tpu7x:2x2x1
jax: 0.10.0
libtpu: 0.0.40
codegen_flags: <defaults>
</compile_context>

<pallas_src>
import jax
import jax.numpy as jnp
from jax.experimental import pallas as pl
from jax.experimental.pallas import tpu as pltpu

# ----------------------------- configuration -------------------------------
B = 2                        # batch
S = 8                        # sequence length
MEM = 32                     # mem_dim
LAYERS = 2                   # gcn layers
HEAD = MEM // LAYERS         # head_dim = 16
BUF = MEM + HEAD * LAYERS    # fixed cache width: [ x | g_0 | ... | g_{L-1} ] = 64


# ------------------------------ Pallas kernel ------------------------------
def gcn_kernel(adj_ref, x_ref, wl_ref, bl2_ref, wout_ref, bout_ref,
               out_ref, buf_ref):
    """Whole-batch GCN forward in one invocation.

    adj_ref : (B, S, S)           x_ref   : (B*S, MEM)
    wl_ref  : (LAYERS, BUF, HEAD) zero-padded per-layer weights (transposed)
    bl2_ref : (LAYERS, 1, HEAD)   holds 2*bias (fold of W(Ax)+W(x))
    wout_ref: (MEM, MEM)          bout_ref: (1, MEM)
    out_ref : (B*S, MEM)
    buf_ref : (B*S, BUF) VMEM scratch (fixed-width feature cache)
    """
    x = x_ref[...]                                    # (B*S, MEM)

    # Fixed-width cache replaces the growing concatenate; zero-init so the
    # zero-padded weight rows never multiply garbage.
    buf_ref[...] = jnp.zeros_like(buf_ref)
    buf_ref[:, :MEM] = x

    # inv_denom = 1 / (adj.sum(2) + 1), computed once per batch element (EUP).
    inv_denom = []
    for b in range(B):
        d = jnp.sum(adj_ref[b], axis=1, keepdims=True) + 1.0      # (S, 1)
        inv_denom.append(pl.reciprocal(d, approx=True))

    for l in range(LAYERS):
        w_l = wl_ref[l]                               # (BUF, HEAD), rows >= in_l are 0
        b2_l = bl2_ref[l]                             # (1, HEAD) == 2 * bias_l
        # Reassociated: W(Ax) + W(x) == A(xW) + xW   (contraction over HEAD only)
        y = jnp.dot(buf_ref[...], w_l,
                    preferred_element_type=jnp.float32)           # (B*S, HEAD)
        col = MEM + l * HEAD
        for b in range(B):
            y_b = y[b * S:(b + 1) * S, :]                         # (S, HEAD)
            pre = jnp.dot(adj_ref[b], y_b,
                          preferred_element_type=jnp.float32) + y_b + b2_l
            g = jnp.maximum(pre * inv_denom[b], 0.0)              # relu(AxW/denom)
            buf_ref[b * S:(b + 1) * S, col:col + HEAD] = g

    # gcn_outputs = cat(output_list) + gcn_inputs ; then linear_output
    gcn_out = buf_ref[:, MEM:MEM + LAYERS * HEAD] + x             # (B*S, MEM)
    out = jnp.dot(gcn_out, wout_ref[...],
                  preferred_element_type=jnp.float32) + bout_ref[...]
    out_ref[...] = out.astype(out_ref.dtype)


def gcn_forward_pallas(adj, gcn_inputs, params):
    x2d = gcn_inputs.reshape(B * S, MEM)
    out2d = pl.pallas_call(
        gcn_kernel,
        out_shape=jax.ShapeDtypeStruct((B * S, MEM), jnp.float32),
        in_specs=[
            pl.BlockSpec((B, S, S), lambda: (0, 0, 0)),
            pl.BlockSpec((B * S, MEM), lambda: (0, 0)),
            pl.BlockSpec((LAYERS, BUF, HEAD), lambda: (0, 0, 0)),
            pl.BlockSpec((LAYERS, 1, HEAD), lambda: (0, 0, 0)),
            pl.BlockSpec((MEM, MEM), lambda: (0, 0)),
            pl.BlockSpec((1, MEM), lambda: (0, 0)),
        ],
        out_specs=pl.BlockSpec((B * S, MEM), lambda: (0, 0)),
        scratch_shapes=[pltpu.VMEM((B * S, BUF), jnp.float32)],
    )(adj, x2d, params["wl_packed"], params["bl2_packed"],
      params["wout"], params["bout"])
    return out2d.reshape(B, S, MEM)


# --------------------------- pure-JAX reference -----------------------------
def reference_forward(adj, gcn_inputs, params):
    x = gcn_inputs
    denom = adj.sum(2, keepdims=True) + 1.0
    outputs = x
    cache = [outputs]
    outs = []
    for l in range(LAYERS):
        W = params["wl_list"][l]                      # (in_l, HEAD)
        b = params["bl_list"][l]                      # (HEAD,)
        Ax = jnp.einsum("bij,bjd->bid", adj, outputs)
        AxW = (Ax @ W + b) + (outputs @ W + b)
        g = jax.nn.relu(AxW / denom)
        cache.append(g)
        outs.append(g)                                # gcn_drop = identity (eval)
        outputs = jnp.concatenate(cache, axis=2)
    gcn_out = jnp.concatenate(outs, axis=2) + x
    return gcn_out @ params["wout"] + params["bout"]


# ------------------------------ parameters ----------------------------------
def init_params(key):
    ks = iter(jax.random.split(key, 16))

    def mat(shape, fan_in):
        return jax.random.normal(next(ks), shape, jnp.float32) / jnp.sqrt(fan_in)

    p = {}
    wl_list, bl_list = [], []
    wl_packed = jnp.zeros((LAYERS, BUF, HEAD), jnp.float32)
    bl2_packed = jnp.zeros((LAYERS, 1, HEAD), jnp.float32)
    for l in range(LAYERS):
        in_l = MEM + HEAD * l
        W = mat((in_l, HEAD), MEM)                    # std ~ 1/sqrt(mem_dim)
        b = mat((HEAD,), HEAD)
        wl_list.append(W)
        bl_list.append(b)
        # Zero-padded rows >= in_l are REQUIRED for correctness of the
        # fixed-width buffer contraction inside the kernel.
        wl_packed = wl_packed.at[l, :in_l, :].set(W)
        bl2_packed = bl2_packed.at[l, 0, :].set(2.0 * b)   # fold double bias
    p["wl_list"], p["bl_list"] = wl_list, bl_list
    p["wl_packed"], p["bl2_packed"] = wl_packed, bl2_packed
    # linear_output: (MEM -> MEM), stored transposed
    p["wout"] = mat((MEM, MEM), MEM)
    p["bout"] = mat((1, MEM), MEM)
    return p


# --------------------------------- main --------------------------------------
if __name__ == "__main__":
    key = jax.random.PRNGKey(0)
    k_adj, k_x, k_p = jax.random.split(key, 3)

    adj = (jax.random.uniform(k_adj, (B, S, S)) > 0.5).astype(jnp.float32)
    gcn_inputs = jax.random.normal(k_x, (B, S, MEM), jnp.float32)
    params = init_params(k_p)

    out = graph_out = gcn_forward_pallas(adj, gcn_inputs, params)
    out = jax.block_until_ready(out)

    ref = jax.block_until_ready(reference_forward(adj, gcn_inputs, params))
    assert out.shape == (B, S, MEM)
    assert jnp.allclose(out, ref, rtol=1e-2, atol=1e-2), (
        float(jnp.max(jnp.abs(out - ref))))

    print("KERNEL_OK")
</pallas_src>

<mosaic_0001>
module attributes {stable_mosaic.version = 11 : i64} {
  func.func @gcn_kernel(%arg0: memref<2x8x8xf32, #tpu.memory_space<vmem>>, %arg1: memref<16x32xf32, #tpu.memory_space<vmem>>, %arg2: memref<2x64x16xf32, #tpu.memory_space<vmem>>, %arg3: memref<2x1x16xf32, #tpu.memory_space<vmem>>, %arg4: memref<32x32xf32, #tpu.memory_space<vmem>>, %arg5: memref<1x32xf32, #tpu.memory_space<vmem>>, %arg6: memref<16x32xf32, #tpu.memory_space<vmem>>, %arg7: memref<16x64xf32, #tpu.memory_space<vmem>>) attributes {dimension_semantics = [], scalar_prefetch = 0 : i64, scratch_operands = 1 : i64, tpu.core_type = #tpu.core_type<tc>} {
    %c0 = arith.constant 0 : index
    %c0_0 = arith.constant 0 : index
    %0 = vector.load %arg1[%c0, %c0_0] : memref<16x32xf32, #tpu.memory_space<vmem>>, vector<16x32xf32>
    %cst = arith.constant 0.000000e+00 : f32
    %1 = vector.broadcast %cst : f32 to vector<16x64xf32>
    %c0_1 = arith.constant 0 : index
    %c0_2 = arith.constant 0 : index
    %2 = vector.load %arg7[%c0_1, %c0_2] : memref<16x64xf32, #tpu.memory_space<vmem>>, vector<16x64xf32>
    tpu.vector_store %arg7[%c0_1, %c0_2], %1 {strides = array<i32>} : memref<16x64xf32, #tpu.memory_space<vmem>>, vector<16x64xf32>,
    %c0_3 = arith.constant 0 : index
    %c0_4 = arith.constant 0 : index
    %3 = vector.load %arg7[%c0_3, %c0_4] : memref<16x64xf32, #tpu.memory_space<vmem>>, vector<16x32xf32>
    tpu.vector_store %arg7[%c0_3, %c0_4], %0 {strides = array<i32>} : memref<16x64xf32, #tpu.memory_space<vmem>>, vector<16x32xf32>,
    %c0_5 = arith.constant 0 : index
    %c0_6 = arith.constant 0 : index
    %c0_7 = arith.constant 0 : index
    %4 = vector.load %arg0[%c0_5, %c0_6, %c0_7] : memref<2x8x8xf32, #tpu.memory_space<vmem>>, vector<1x8x8xf32>
    %5 = vector.shape_cast %4 : vector<1x8x8xf32> to vector<8x8xf32>
    %cst_8 = arith.constant dense<0.000000e+00> : vector<8xf32>
    %6 = vector.multi_reduction <add>, %5, %cst_8 [1] : vector<8x8xf32> to vector<8xf32>
    %7 = vector.shape_cast %6 : vector<8xf32> to vector<8x1xf32>
    %cst_9 = arith.constant 1.000000e+00 : f32
    %8 = vector.broadcast %cst_9 : f32 to vector<8x1xf32>
    %9 = arith.addf %7, %8 : vector<8x1xf32>
    %10 = tpu.reciprocal %9 {approx = true} : vector<8x1xf32> -> vector<8x1xf32>
    %c1 = arith.constant 1 : index
    %c0_10 = arith.constant 0 : index
    %c0_11 = arith.constant 0 : index
    %11 = vector.load %arg0[%c1, %c0_10, %c0_11] : memref<2x8x8xf32, #tpu.memory_space<vmem>>, vector<1x8x8xf32>
    %12 = vector.shape_cast %11 : vector<1x8x8xf32> to vector<8x8xf32>
    %cst_12 = arith.constant dense<0.000000e+00> : vector<8xf32>
    %13 = vector.multi_reduction <add>, %12, %cst_12 [1] : vector<8x8xf32> to vector<8xf32>
    %14 = vector.shape_cast %13 : vector<8xf32> to vector<8x1xf32>
    %cst_13 = arith.constant 1.000000e+00 : f32
    %15 = vector.broadcast %cst_13 : f32 to vector<8x1xf32>
    %16 = arith.addf %14, %15 : vector<8x1xf32>
    %17 = tpu.reciprocal %16 {approx = true} : vector<8x1xf32> -> vector<8x1xf32>
    %c0_14 = arith.constant 0 : index
    %c0_15 = arith.constant 0 : index
    %c0_16 = arith.constant 0 : index
    %18 = vector.load %arg2[%c0_14, %c0_15, %c0_16] : memref<2x64x16xf32, #tpu.memory_space<vmem>>, vector<1x64x16xf32>
    %19 = vector.shape_cast %18 : vector<1x64x16xf32> to vector<64x16xf32>
    %c0_17 = arith.constant 0 : index
    %c0_18 = arith.constant 0 : index
    %c0_19 = arith.constant 0 : index
    %20 = vector.load %arg3[%c0_17, %c0_18, %c0_19] : memref<2x1x16xf32, #tpu.memory_space<vmem>>, vector<1x1x16xf32>
    %21 = vector.shape_cast %20 : vector<1x1x16xf32> to vector<1x16xf32>
    %c0_20 = arith.constant 0 : index
    %c0_21 = arith.constant 0 : index
    %22 = vector.load %arg7[%c0_20, %c0_21] : memref<16x64xf32, #tpu.memory_space<vmem>>, vector<16x64xf32>
    %cst_22 = arith.constant dense<0.000000e+00> : vector<16x16xf32>
    %23 = tpu.matmul %22, %19, %cst_22 {dimension_numbers = #tpu.dot_dimension_numbers<[1], [0], [0], [1], [0, 0, 1, 1], [], []>} : vector<16x64xf32>, vector<64x16xf32>, vector<16x16xf32> -> vector<16x16xf32>
    %24 = vector.extract_strided_slice %23 {offsets = [0, 0], sizes = [8, 16], strides = [1, 1]} : vector<16x16xf32> to vector<8x16xf32>
    %c0_23 = arith.constant 0 : index
    %c0_24 = arith.constant 0 : index
    %c0_25 = arith.constant 0 : index
    %25 = vector.load %arg0[%c0_23, %c0_24, %c0_25] : memref<2x8x8xf32, #tpu.memory_space<vmem>>, vector<1x8x8xf32>
    %26 = vector.shape_cast %25 : vector<1x8x8xf32> to vector<8x8xf32>
    %cst_26 = arith.constant dense<0.000000e+00> : vector<8x16xf32>
    %27 = tpu.matmul %26, %24, %cst_26 {dimension_numbers = #tpu.dot_dimension_numbers<[1], [0], [0], [1], [0, 0, 1, 1], [], []>} : vector<8x8xf32>, vector<8x16xf32>, vector<8x16xf32> -> vector<8x16xf32>
    %28 = arith.addf %27, %24 : vector<8x16xf32>
    %29 = vector.broadcast %21 : vector<1x16xf32> to vector<8x16xf32>
    %30 = arith.addf %28, %29 : vector<8x16xf32>
    %31 = vector.broadcast %10 : vector<8x1xf32> to vector<8x16xf32>
    %32 = arith.mulf %30, %31 : vector<8x16xf32>
    %cst_27 = arith.constant 0.000000e+00 : f32
    %33 = vector.broadcast %cst_27 : f32 to vector<8x16xf32>
    %34 = arith.maximumf %32, %33 : vector<8x16xf32>
    %c0_28 = arith.constant 0 : index
    %c32 = arith.constant 32 : index
    %35 = vector.load %arg7[%c0_28, %c32] : memref<16x64xf32, #tpu.memory_space<vmem>>, vector<8x16xf32>
    tpu.vector_store %arg7[%c0_28, %c32], %34 {strides = array<i32>} : memref<16x64xf32, #tpu.memory_space<vmem>>, vector<8x16xf32>,
    %36 = vector.extract_strided_slice %23 {offsets = [8, 0], sizes = [8, 16], strides = [1, 1]} : vector<16x16xf32> to vector<8x16xf32>
    %c1_29 = arith.constant 1 : index
    %c0_30 = arith.constant 0 : index
    %c0_31 = arith.constant 0 : index
    %37 = vector.load %arg0[%c1_29, %c0_30, %c0_31] : memref<2x8x8xf32, #tpu.memory_space<vmem>>, vector<1x8x8xf32>
    %38 = vector.shape_cast %37 : vector<1x8x8xf32> to vector<8x8xf32>
    %cst_32 = arith.constant dense<0.000000e+00> : vector<8x16xf32>
    %39 = tpu.matmul %38, %36, %cst_32 {dimension_numbers = #tpu.dot_dimension_numbers<[1], [0], [0], [1], [0, 0, 1, 1], [], []>} : vector<8x8xf32>, vector<8x16xf32>, vector<8x16xf32> -> vector<8x16xf32>
    %40 = arith.addf %39, %36 : vector<8x16xf32>
    %41 = vector.broadcast %21 : vector<1x16xf32> to vector<8x16xf32>
    %42 = arith.addf %40, %41 : vector<8x16xf32>
    %43 = vector.broadcast %17 : vector<8x1xf32> to vector<8x16xf32>
    %44 = arith.mulf %42, %43 : vector<8x16xf32>
    %cst_33 = arith.constant 0.000000e+00 : f32
    %45 = vector.broadcast %cst_33 : f32 to vector<8x16xf32>
    %46 = arith.maximumf %44, %45 : vector<8x16xf32>
    %c8 = arith.constant 8 : index
    %c32_34 = arith.constant 32 : index
    %47 = vector.load %arg7[%c8, %c32_34] : memref<16x64xf32, #tpu.memory_space<vmem>>, vector<8x16xf32>
    tpu.vector_store %arg7[%c8, %c32_34], %46 {strides = array<i32>} : memref<16x64xf32, #tpu.memory_space<vmem>>, vector<8x16xf32>,
    %c1_35 = arith.constant 1 : index
    %c0_36 = arith.constant 0 : index
    %c0_37 = arith.constant 0 : index
    %48 = vector.load %arg2[%c1_35, %c0_36, %c0_37] : memref<2x64x16xf32, #tpu.memory_space<vmem>>, vector<1x64x16xf32>
    %49 = vector.shape_cast %48 : vector<1x64x16xf32> to vector<64x16xf32>
    %c1_38 = arith.constant 1 : index
    %c0_39 = arith.constant 0 : index
    %c0_40 = arith.constant 0 : index
    %50 = vector.load %arg3[%c1_38, %c0_39, %c0_40] : memref<2x1x16xf32, #tpu.memory_space<vmem>>, vector<1x1x16xf32>
    %51 = vector.shape_cast %50 : vector<1x1x16xf32> to vector<1x16xf32>
    %c0_41 = arith.constant 0 : index
    %c0_42 = arith.constant 0 : index
    %52 = vector.load %arg7[%c0_41, %c0_42] : memref<16x64xf32, #tpu.memory_space<vmem>>, vector<16x64xf32>
    %cst_43 = arith.constant dense<0.000000e+00> : vector<16x16xf32>
    %53 = tpu.matmul %52, %49, %cst_43 {dimension_numbers = #tpu.dot_dimension_numbers<[1], [0], [0], [1], [0, 0, 1, 1], [], []>} : vector<16x64xf32>, vector<64x16xf32>, vector<16x16xf32> -> vector<16x16xf32>
    %54 = vector.extract_strided_slice %53 {offsets = [0, 0], sizes = [8, 16], strides = [1, 1]} : vector<16x16xf32> to vector<8x16xf32>
    %c0_44 = arith.constant 0 : index
    %c0_45 = arith.constant 0 : index
    %c0_46 = arith.constant 0 : index
    %55 = vector.load %arg0[%c0_44, %c0_45, %c0_46] : memref<2x8x8xf32, #tpu.memory_space<vmem>>, vector<1x8x8xf32>
    %56 = vector.shape_cast %55 : vector<1x8x8xf32> to vector<8x8xf32>
    %cst_47 = arith.constant dense<0.000000e+00> : vector<8x16xf32>
    %57 = tpu.matmul %56, %54, %cst_47 {dimension_numbers = #tpu.dot_dimension_numbers<[1], [0], [0], [1], [0, 0, 1, 1], [], []>} : vector<8x8xf32>, vector<8x16xf32>, vector<8x16xf32> -> vector<8x16xf32>
    %58 = arith.addf %57, %54 : vector<8x16xf32>
    %59 = vector.broadcast %51 : vector<1x16xf32> to vector<8x16xf32>
    %60 = arith.addf %58, %59 : vector<8x16xf32>
    %61 = vector.broadcast %10 : vector<8x1xf32> to vector<8x16xf32>
    %62 = arith.mulf %60, %61 : vector<8x16xf32>
    %cst_48 = arith.constant 0.000000e+00 : f32
    %63 = vector.broadcast %cst_48 : f32 to vector<8x16xf32>
    %64 = arith.maximumf %62, %63 : vector<8x16xf32>
    %c0_49 = arith.constant 0 : index
    %c48 = arith.constant 48 : index
    %65 = vector.load %arg7[%c0_49, %c48] : memref<16x64xf32, #tpu.memory_space<vmem>>, vector<8x16xf32>
    tpu.vector_store %arg7[%c0_49, %c48], %64 {strides = array<i32>} : memref<16x64xf32, #tpu.memory_space<vmem>>, vector<8x16xf32>,
    %66 = vector.extract_strided_slice %53 {offsets = [8, 0], sizes = [8, 16], strides = [1, 1]} : vector<16x16xf32> to vector<8x16xf32>
    %c1_50 = arith.constant 1 : index
    %c0_51 = arith.constant 0 : index
    %c0_52 = arith.constant 0 : index
    %67 = vector.load %arg0[%c1_50, %c0_51, %c0_52] : memref<2x8x8xf32, #tpu.memory_space<vmem>>, vector<1x8x8xf32>
    %68 = vector.shape_cast %67 : vector<1x8x8xf32> to vector<8x8xf32>
    %cst_53 = arith.constant dense<0.000000e+00> : vector<8x16xf32>
    %69 = tpu.matmul %68, %66, %cst_53 {dimension_numbers = #tpu.dot_dimension_numbers<[1], [0], [0], [1], [0, 0, 1, 1], [], []>} : vector<8x8xf32>, vector<8x16xf32>, vector<8x16xf32> -> vector<8x16xf32>
    %70 = arith.addf %69, %66 : vector<8x16xf32>
    %71 = vector.broadcast %51 : vector<1x16xf32> to vector<8x16xf32>
    %72 = arith.addf %70, %71 : vector<8x16xf32>
    %73 = vector.broadcast %17 : vector<8x1xf32> to vector<8x16xf32>
    %74 = arith.mulf %72, %73 : vector<8x16xf32>
    %cst_54 = arith.constant 0.000000e+00 : f32
    %75 = vector.broadcast %cst_54 : f32 to vector<8x16xf32>
    %76 = arith.maximumf %74, %75 : vector<8x16xf32>
    %c8_55 = arith.constant 8 : index
    %c48_56 = arith.constant 48 : index
    %77 = vector.load %arg7[%c8_55, %c48_56] : memref<16x64xf32, #tpu.memory_space<vmem>>, vector<8x16xf32>
    tpu.vector_store %arg7[%c8_55, %c48_56], %76 {strides = array<i32>} : memref<16x64xf32, #tpu.memory_space<vmem>>, vector<8x16xf32>,
    %c0_57 = arith.constant 0 : index
    %c32_58 = arith.constant 32 : index
    %78 = vector.load %arg7[%c0_57, %c32_58] : memref<16x64xf32, #tpu.memory_space<vmem>>, vector<16x32xf32>
    %79 = arith.addf %78, %0 : vector<16x32xf32>
    %c0_59 = arith.constant 0 : index
    %c0_60 = arith.constant 0 : index
    %80 = vector.load %arg4[%c0_59, %c0_60] : memref<32x32xf32, #tpu.memory_space<vmem>>, vector<32x32xf32>
    %cst_61 = arith.constant dense<0.000000e+00> : vector<16x32xf32>
    %81 = tpu.matmul %79, %80, %cst_61 {dimension_numbers = #tpu.dot_dimension_numbers<[1], [0], [0], [1], [0, 0, 1, 1], [], []>} : vector<16x32xf32>, vector<32x32xf32>, vector<16x32xf32> -> vector<16x32xf32>
    %c0_62 = arith.constant 0 : index
    %c0_63 = arith.constant 0 : index
    %82 = vector.load %arg5[%c0_62, %c0_63] : memref<1x32xf32, #tpu.memory_space<vmem>>, vector<1x32xf32>
    %83 = vector.broadcast %82 : vector<1x32xf32> to vector<16x32xf32>
    %84 = arith.addf %81, %83 : vector<16x32xf32>
    %c0_64 = arith.constant 0 : index
    %c0_65 = arith.constant 0 : index
    %85 = vector.load %arg6[%c0_64, %c0_65] : memref<16x32xf32, #tpu.memory_space<vmem>>, vector<16x32xf32>
    tpu.vector_store %arg6[%c0_64, %c0_65], %84 {strides = array<i32>} : memref<16x32xf32, #tpu.memory_space<vmem>>, vector<16x32xf32>,
    return
  }
}

</mosaic_0001>

<llo_original>
// kernel: tpu_custom_call.1
$region0: #{tpu_custom_call.1}
  #allocation0 [shape = 'u32[]', space=smem, size = 0x4, offset = 0x4, fixed_abs, tag = 'smem constant byte address 0x4 - core index']
  #allocation1 [shape = 'u32[144,128]{1,0:T(1,128)}', space=vmem, size = 0x12000, scoped, tag = 'internal scratch']
  #allocation2 [shape = 'f32[16,64]{1,0:T(8,128)}', space=vmem, size = 0x2000, scoped, tag = 'scratch operand']
  %s0 = inlined_call_operand.vmem [shape: f32[2,8,8], index: 0, kind: input, shape index: {}]
  %s1 = inlined_call_operand.vmem [shape: f32[16,32], index: 1, kind: input, shape index: {}]
  %s2 = inlined_call_operand.vmem [shape: f32[2,64,16], index: 2, kind: input, shape index: {}]
  %s3 = inlined_call_operand.vmem [shape: f32[2,1,16], index: 3, kind: input, shape index: {}]
  %s4 = inlined_call_operand.vmem [shape: f32[32,32], index: 4, kind: input, shape index: {}]
  %s5 = inlined_call_operand.vmem [shape: f32[1,32], index: 5, kind: input, shape index: {}]
  %s6 = inlined_call_operand.hbm [shape: f32[16,32], index: 6, kind: output, shape index: {}]
  %s7 = sld [smem:[#allocation0]]
  $region34: #{tpu_custom_call.1} parent=0
    _
  %s9 = ssub.s32 1, %s7
  %s10 = scalar_select 0, %s9, %s7
  $region1: #{tpu_custom_call.1} parent=0
    #allocation3 [shape = 'u8[8192]{0}', space=vmem, size = 0x2000, scoped, tag = 'output window, operand 0, single buffered']
    #allocation4 [shape = 's32[1]{0}', space=sflag, size = 0x4, scoped, tag = 'scoped memory for tpu_custom_call.1']
    %11 = vsyncpa [#allocation4], 0
    // Predicated region
    $region2: #{tpu_custom_call.1} parent=1 // pred_check
      _
    $region3: #{tpu_custom_call.1} parent=1 // pred_check_branch
      %13 = sbr.rel (0) target = $region5
    $region4: #{tpu_custom_call.1} parent=1 // pred_region
      _
    $region5: #{tpu_custom_call.1} parent=1 // pred_fallthru
      _
    // Predicated region
    $region6: #{tpu_custom_call.1} parent=1 // pred_check
      _
    $region7: #{tpu_custom_call.1} parent=1 // pred_check_branch
      %15 = sbr.rel (0) target = $region9
    $region8: #{tpu_custom_call.1} parent=1 // pred_region
      _
    $region9: #{tpu_custom_call.1} parent=1 // pred_fallthru
      _
    // Predicated region
    $region10: #{tpu_custom_call.1} parent=1 // pred_check
      _
    $region11: #{tpu_custom_call.1} parent=1 // pred_check_branch
      %17 = sbr.rel (0) target = $region13
    $region12: #{tpu_custom_call.1} parent=1 // pred_region
      _
    $region13: #{tpu_custom_call.1} parent=1 // pred_fallthru
      _
    // Predicated region
    $region14: #{tpu_custom_call.1} parent=1 // pred_check
      _
    $region15: #{tpu_custom_call.1} parent=1 // pred_check_branch
      %19 = sbr.rel (0) target = $region17
    $region16: #{tpu_custom_call.1} parent=1 // pred_region
      _
    $region17: #{tpu_custom_call.1} parent=1 // pred_fallthru
      _
    // Predicated region
    $region18: #{tpu_custom_call.1} parent=1 // pred_check
      _
    $region19: #{tpu_custom_call.1} parent=1 // pred_check_branch
      %21 = sbr.rel (0) target = $region21
    $region20: #{tpu_custom_call.1} parent=1 // pred_region
      _
    $region21: #{tpu_custom_call.1} parent=1 // pred_fallthru
      _
    // Predicated region
    $region22: #{tpu_custom_call.1} parent=1 // pred_check
      _
    $region23: #{tpu_custom_call.1} parent=1 // pred_check_branch
      %23 = sbr.rel (0) target = $region25
    $region24: #{tpu_custom_call.1} parent=1 // pred_region
      _
    $region25: #{tpu_custom_call.1} parent=1 // pred_fallthru
      _
    %v24 = vld [vmem:[%s1] sm:$0xff]
    %v25 = vld [vmem:[%s1 + $0x8] sm:$0xff]
    %vm26 = vcmask 523264
    %27 = vst.msk [vmem:[#allocation2] sm:$0xff] %vm26, 0.0
    %28 = vst.msk [vmem:[#allocation2 + $0x8] sm:$0xff] %vm26, 0.0
    %vm29 = vcmask 261120
    %30 = vst.msk [vmem:[#allocation2] sm:$0xff] %vm29, %v24
    %31 = vst.msk [vmem:[#allocation2 + $0x8] sm:$0xff] %vm29, %v25
    %v32 = vld [vmem:[%s0] sm:$0xff]
    %vm33 = vcmask 64512
    %v34 = vsel %vm33, %v32, 0.0
    %35 = vadd.xlane.f32.xlu0 %v34
    %v36 = vpop.xlane.xlu0 %35
    %v37 = vadd.f32 %v36, 1.0
    %v38 = vrcp.pop %v37
    %s39 = scalar_lea.vmem %s0, 8
    %v40 = vld [vmem:[%s39] sm:$0xff]
    %v41 = vsel %vm33, %v40, 0.0
    %42 = vadd.xlane.f32.xlu0 %v41
    %v43 = vpop.xlane.xlu0 %42
    %v44 = vadd.f32 %v43, 1.0
    %v45 = vrcp.pop %v44
    %v46 = vld [vmem:[%s2] sm:$0xff]
    %v47 = vld [vmem:[%s2 + $0x8] sm:$0xff]
    %v48 = vld [vmem:[%s2 + $0x10] sm:$0xff]
    %v49 = vld [vmem:[%s2 + $0x18] sm:$0xff]
    %v50 = vld [vmem:[%s2 + $0x20] sm:$0xff]
    %v51 = vld [vmem:[%s2 + $0x28] sm:$0xff]
    %v52 = vld [vmem:[%s2 + $0x30] sm:$0xff]
    %v53 = vld [vmem:[%s2 + $0x38] sm:$0xff]
    %v54 = vld [vmem:[%s3] sm:$0x1]
    %v55 = vld [vmem:[#allocation2] sm:$0xff]
    %v56 = vld [vmem:[#allocation2 + $0x8] sm:$0xff]
    %v58 = vsel %vm26, %v55, 0
    %v61 = vsel %vm26, %v56, 0
    %63 = vmatprep.subr.mxu0 0.0
    %64 = vmatpush1.msra.mxu0 %v46
    %65 = vmatprep.subr.mxu0 0.0
    %66 = vmatpush1.msra.mxu0 %v47
    %67 = vmatprep.subr.mxu0 0.0
    %68 = vmatpush1.msra.mxu0 %v48
    %69 = vmatprep.subr.mxu0 0.0
    %70 = vmatpush1.msra.mxu0 %v49
    %71 = vmatprep.subr.mxu0 0.0
    %72 = vmatpush1.msra.mxu0 %v50
    %73 = vmatprep.subr.mxu0 0.0
    %74 = vmatpush1.msra.mxu0 %v51
    %75 = vmatprep.subr.mxu0 0.0
    %76 = vmatpush1.msra.mxu0 %v52
    %77 = vmatprep.subr.mxu0 0.0
    %78 = vmatpush1.msra.mxu0 %v53
    %79 = vmatprep.subr.mxu0 0.0
    %80 = vmatpush1.msra.mxu0 0.0
    %81 = vmatprep.subr.mxu0 0.0
    %82 = vmatpush1.msra.mxu0 0.0
    %83 = vmatprep.subr.mxu0 0.0
    %84 = vmatpush1.msra.mxu0 0.0
    %85 = vmatprep.subr.mxu0 0.0
    %86 = vmatpush1.msra.mxu0 0.0
    %87 = vmatprep.subr.mxu0 0.0
    %88 = vmatpush1.msra.mxu0 0.0
    %89 = vmatprep.subr.mxu0 0.0
    %90 = vmatpush1.msra.mxu0 0.0
    %91 = vmatprep.subr.mxu0 0.0
    %92 = vmatpush1.msra.mxu0 0.0
    %93 = vmatprep.subr.mxu0 0.0
    %94 = vmatpush1.msra.mxu0 0.0
    %95 = vmatprep.subr.mxu0 0.0
    %96 = vmatpush1.msra.mxu0 0.0
    %97 = vmatprep.subr.mxu0 0.0
    %98 = vmatpush1.msra.mxu0 0.0
    %99 = vmatprep.subr.mxu0 0.0
    %100 = vmatpush1.msra.mxu0 0.0
    %101 = vmatprep.subr.mxu0 0.0
    %102 = vmatpush1.msra.mxu0 0.0
    %103 = vmatprep.subr.mxu0 0.0
    %104 = vmatpush1.msra.mxu0 0.0
    %105 = vmatprep.subr.mxu0 0.0
    %106 = vmatpush1.msra.mxu0 0.0
    %107 = vmatprep.subr.mxu0 0.0
    %108 = vmatpush1.msra.mxu0 0.0
    %109 = vmatprep.subr.mxu0 0.0
    %110 = vmatpush1.msra.mxu0 0.0
    %111 = vmatprep.subr.mxu0 0.0
    %112 = vmatpush1.msra.mxu0 0.0
    %113 = vmatprep.subr.mxu0 0.0
    %114 = vmatpush1.msra.mxu0 0.0
    %115 = vmatprep.subr.mxu0 0.0
    %116 = vmatpush1.msra.mxu0 0.0
    %117 = vmatprep.subr.mxu0 0.0
    %118 = vmatpush1.msra.mxu0 0.0
    %119 = vmatprep.subr.mxu0 0.0
    %120 = vmatpush1.msra.mxu0 0.0
    %121 = vmatprep.subr.mxu0 0.0
    %122 = vmatpush1.msra.mxu0 0.0
    %123 = vmatprep.subr.mxu0 0.0
    %124 = vmatpush1.msra.mxu0 0.0
    %125 = vmatprep.subr.mxu0 0.0
    %126 = vmatpush1.msra.mxu0 0.0
    %127 = vmatprep.mubr.f32.mxu0 0.0
    %128 = vmatmul.mubr.f32.gmra.mrb[0].mxu0 %v58
    %v129 = vpop.f32.mrb[0].mxu0
    %v130 = vadd.f32 0.0, %v129
    %v131 = vpop.f32.mrb[0].mxu0
    %132 = vmatprep.mubr.f32.mxu0 0.0
    %133 = vmatmul.mubr.f32.gmra.mrb[0].mxu0 %v61
    %v134 = vpop.f32.mrb[0].mxu0
    %v135 = vadd.f32 0.0, %v134
    %v136 = vpop.f32.mrb[0].mxu0
    %137 = vdwg.mxu0
    %v139 = vsel %vm33, %v32, 0
    %141 = vmatprep.subr.mxu0 0.0
    %142 = vmatpush1.msra.mxu0 %v130
    %143 = vmatprep.subr.mxu0 0.0
    %144 = vmatpush1.msra.mxu0 0.0
    %145 = vmatprep.subr.mxu0 0.0
    %146 = vmatpush1.msra.mxu0 0.0
    %147 = vmatprep.subr.mxu0 0.0
    %148 = vmatpush1.msra.mxu0 0.0
    %149 = vmatprep.subr.mxu0 0.0
    %150 = vmatpush1.msra.mxu0 0.0
    %151 = vmatprep.subr.mxu0 0.0
    %152 = vmatpush1.msra.mxu0 0.0
    %153 = vmatprep.subr.mxu0 0.0
    %154 = vmatpush1.msra.mxu0 0.0
    %155 = vmatprep.subr.mxu0 0.0
    %156 = vmatpush1.msra.mxu0 0.0
    %157 = vmatprep.subr.mxu0 0.0
    %158 = vmatpush1.msra.mxu0 0.0
    %159 = vmatprep.subr.mxu0 0.0
    %160 = vmatpush1.msra.mxu0 0.0
    %161 = vmatprep.subr.mxu0 0.0
    %162 = vmatpush1.msra.mxu0 0.0
    %163 = vmatprep.subr.mxu0 0.0
    %164 = vmatpush1.msra.mxu0 0.0
    %165 = vmatprep.subr.mxu0 0.0
    %166 = vmatpush1.msra.mxu0 0.0
    %167 = vmatprep.subr.mxu0 0.0
    %168 = vmatpush1.msra.mxu0 0.0
    %169 = vmatprep.subr.mxu0 0.0
    %170 = vmatpush1.msra.mxu0 0.0
    %171 = vmatprep.subr.mxu0 0.0
    %172 = vmatpush1.msra.mxu0 0.0
    %173 = vmatprep.subr.mxu0 0.0
    %174 = vmatpush1.msra.mxu0 0.0
    %175 = vmatprep.subr.mxu0 0.0
    %176 = vmatpush1.msra.mxu0 0.0
    %177 = vmatprep.subr.mxu0 0.0
    %178 = vmatpush1.msra.mxu0 0.0
    %179 = vmatprep.subr.mxu0 0.0
    %180 = vmatpush1.msra.mxu0 0.0
    %181 = vmatprep.subr.mxu0 0.0
    %182 = vmatpush1.msra.mxu0 0.0
    %183 = vmatprep.subr.mxu0 0.0
    %184 = vmatpush1.msra.mxu0 0.0
    %185 = vmatprep.subr.mxu0 0.0
    %186 = vmatpush1.msra.mxu0 0.0
    %187 = vmatprep.subr.mxu0 0.0
    %188 = vmatpush1.msra.mxu0 0.0
    %189 = vmatprep.subr.mxu0 0.0
    %190 = vmatpush1.msra.mxu0 0.0
    %191 = vmatprep.subr.mxu0 0.0
    %192 = vmatpush1.msra.mxu0 0.0
    %193 = vmatprep.subr.mxu0 0.0
    %194 = vmatpush1.msra.mxu0 0.0
    %195 = vmatprep.subr.mxu0 0.0
    %196 = vmatpush1.msra.mxu0 0.0
    %197 = vmatprep.subr.mxu0 0.0
    %198 = vmatpush1.msra.mxu0 0.0
    %199 = vmatprep.subr.mxu0 0.0
    %200 = vmatpush1.msra.mxu0 0.0
    %201 = vmatprep.subr.mxu0 0.0
    %202 = vmatpush1.msra.mxu0 0.0
    %203 = vmatprep.subr.mxu0 0.0
    %204 = vmatpush1.msra.mxu0 0.0
    %205 = vmatprep.mubr.f32.mxu0 0.0
    %206 = vmatmul.mubr.f32.gmra.mrb[0].mxu0 %v139
    %v207 = vpop.f32.mrb[0].mxu0
    %v208 = vadd.f32 %v130, %v207
    %v209 = vpop.f32.mrb[0].mxu0
    %210 = vdwg.mxu0
    %v212 = vlaneseq
    %v213 = vshrl.u32 %v212, 7
    %v214 = vsub.s32 0, %v213
    %v215 = vrot.slane %v54, %v214
    %v217 = vadd.f32 %v208, %v215
    %v218 = vmul.f32 %v217, %v38
    %v219 = vmax.f32 %v218, 0.0
    %221 = vrot.lane.b32.xlu0 %v219, 32
    %v222 = vpop.permute.xlu0 %221
    %vm224 = vcmask 392448
    %225 = vst.msk [vmem:[#allocation2] sm:$0xff] %vm224, %v222
    %v226 = vld [vmem:[%s39] sm:$0xff]
    %v228 = vsel %vm33, %v226, 0
    %230 = vmatprep.subr.mxu0 0.0
    %231 = vmatpush1.msra.mxu0 %v135
    %232 = vmatprep.subr.mxu0 0.0
    %233 = vmatpush1.msra.mxu0 0.0
    %234 = vmatprep.subr.mxu0 0.0
    %235 = vmatpush1.msra.mxu0 0.0
    %236 = vmatprep.subr.mxu0 0.0
    %237 = vmatpush1.msra.mxu0 0.0
    %238 = vmatprep.subr.mxu0 0.0
    %239 = vmatpush1.msra.mxu0 0.0
    %240 = vmatprep.subr.mxu0 0.0
    %241 = vmatpush1.msra.mxu0 0.0
    %242 = vmatprep.subr.mxu0 0.0
    %243 = vmatpush1.msra.mxu0 0.0
    %244 = vmatprep.subr.mxu0 0.0
    %245 = vmatpush1.msra.mxu0 0.0
    %246 = vmatprep.subr.mxu0 0.0
    %247 = vmatpush1.msra.mxu0 0.0
    %248 = vmatprep.subr.mxu0 0.0
    %249 = vmatpush1.msra.mxu0 0.0
    %250 = vmatprep.subr.mxu0 0.0
    %251 = vmatpush1.msra.mxu0 0.0
    %252 = vmatprep.subr.mxu0 0.0
    %253 = vmatpush1.msra.mxu0 0.0
    %254 = vmatprep.subr.mxu0 0.0
    %255 = vmatpush1.msra.mxu0 0.0
    %256 = vmatprep.subr.mxu0 0.0
    %257 = vmatpush1.msra.mxu0 0.0
    %258 = vmatprep.subr.mxu0 0.0
    %259 = vmatpush1.msra.mxu0 0.0
    %260 = vmatprep.subr.mxu0 0.0
    %261 = vmatpush1.msra.mxu0 0.0
    %262 = vmatprep.subr.mxu0 0.0
    %263 = vmatpush1.msra.mxu0 0.0
    %264 = vmatprep.subr.mxu0 0.0
    %265 = vmatpush1.msra.mxu0 0.0
    %266 = vmatprep.subr.mxu0 0.0
    %267 = vmatpush1.msra.mxu0 0.0
    %268 = vmatprep.subr.mxu0 0.0
    %269 = vmatpush1.msra.mxu0 0.0
    %270 = vmatprep.subr.mxu0 0.0
    %271 = vmatpush1.msra.mxu0 0.0
    %272 = vmatprep.subr.mxu0 0.0
    %273 = vmatpush1.msra.mxu0 0.0
    %274 = vmatprep.subr.mxu0 0.0
    %275 = vmatpush1.msra.mxu0 0.0
    %276 = vmatprep.subr.mxu0 0.0
    %277 = vmatpush1.msra.mxu0 0.0
    %278 = vmatprep.subr.mxu0 0.0
    %279 = vmatpush1.msra.mxu0 0.0
    %280 = vmatprep.subr.mxu0 0.0
    %281 = vmatpush1.msra.mxu0 0.0
    %282 = vmatprep.subr.mxu0 0.0
    %283 = vmatpush1.msra.mxu0 0.0
    %284 = vmatprep.subr.mxu0 0.0
    %285 = vmatpush1.msra.mxu0 0.0
    %286 = vmatprep.subr.mxu0 0.0
    %287 = vmatpush1.msra.mxu0 0.0
    %288 = vmatprep.subr.mxu0 0.0
    %289 = vmatpush1.msra.mxu0 0.0
    %290 = vmatprep.subr.mxu0 0.0
    %291 = vmatpush1.msra.mxu0 0.0
    %292 = vmatprep.subr.mxu0 0.0
    %293 = vmatpush1.msra.mxu0 0.0
    %294 = vmatprep.mubr.f32.mxu0 0.0
    %295 = vmatmul.mubr.f32.gmra.mrb[0].mxu0 %v228
    %v296 = vpop.f32.mrb[0].mxu0
    %v297 = vadd.f32 %v135, %v296
    %v298 = vpop.f32.mrb[0].mxu0
    %299 = vdwg.mxu0
    %v300 = vadd.f32 %v297, %v215
    %v301 = vmul.f32 %v300, %v45
    %v302 = vmax.f32 %v301, 0.0
    %304 = vrot.lane.b32.xlu0 %v302, 32
    %v305 = vpop.permute.xlu0 %304
    %307 = vst.msk [vmem:[#allocation2 + $0x8] sm:$0xff] %vm224, %v305
    %s308 = scalar_lea.vmem %s2, 64
    %v309 = vld [vmem:[%s308] sm:$0xff]
    %v310 = vld [vmem:[%s308 + $0x8] sm:$0xff]
    %v311 = vld [vmem:[%s308 + $0x10] sm:$0xff]
    %v312 = vld [vmem:[%s308 + $0x18] sm:$0xff]
    %v313 = vld [vmem:[%s308 + $0x20] sm:$0xff]
    %v314 = vld [vmem:[%s308 + $0x28] sm:$0xff]
    %v315 = vld [vmem:[%s308 + $0x30] sm:$0xff]
    %v316 = vld [vmem:[%s308 + $0x38] sm:$0xff]
    %s317 = scalar_lea.vmem %s3, 1
    %v318 = vld [vmem:[%s317] sm:$0x1]
    %v319 = vld [vmem:[#allocation2] sm:$0xff]
    %v320 = vld [vmem:[#allocation2 + $0x8] sm:$0xff]
    %v322 = vsel %vm26, %v319, 0
    %v325 = vsel %vm26, %v320, 0
    %327 = vmatprep.subr.mxu0 0.0
    %328 = vmatpush1.msra.mxu0 %v309
    %329 = vmatprep.subr.mxu0 0.0
    %330 = vmatpush1.msra.mxu0 %v310
    %331 = vmatprep.subr.mxu0 0.0
    %332 = vmatpush1.msra.mxu0 %v311
    %333 = vmatprep.subr.mxu0 0.0
    %334 = vmatpush1.msra.mxu0 %v312
    %335 = vmatprep.subr.mxu0 0.0
    %336 = vmatpush1.msra.mxu0 %v313
    %337 = vmatprep.subr.mxu0 0.0
    %338 = vmatpush1.msra.mxu0 %v314
    %339 = vmatprep.subr.mxu0 0.0
    %340 = vmatpush1.msra.mxu0 %v315
    %341 = vmatprep.subr.mxu0 0.0
    %342 = vmatpush1.msra.mxu0 %v316
    %343 = vmatprep.subr.mxu0 0.0
    %344 = vmatpush1.msra.mxu0 0.0
    %345 = vmatprep.subr.mxu0 0.0
    %346 = vmatpush1.msra.mxu0 0.0
    %347 = vmatprep.subr.mxu0 0.0
    %348 = vmatpush1.msra.mxu0 0.0
    %349 = vmatprep.subr.mxu0 0.0
    %350 = vmatpush1.msra.mxu0 0.0
    %351 = vmatprep.subr.mxu0 0.0
    %352 = vmatpush1.msra.mxu0 0.0
    %353 = vmatprep.subr.mxu0 0.0
    %354 = vmatpush1.msra.mxu0 0.0
    %355 = vmatprep.subr.mxu0 0.0
    %356 = vmatpush1.msra.mxu0 0.0
    %357 = vmatprep.subr.mxu0 0.0
    %358 = vmatpush1.msra.mxu0 0.0
    %359 = vmatprep.subr.mxu0 0.0
    %360 = vmatpush1.msra.mxu0 0.0
    %361 = vmatprep.subr.mxu0 0.0
    %362 = vmatpush1.msra.mxu0 0.0
    %363 = vmatprep.subr.mxu0 0.0
    %364 = vmatpush1.msra.mxu0 0.0
    %365 = vmatprep.subr.mxu0 0.0
    %366 = vmatpush1.msra.mxu0 0.0
    %367 = vmatprep.subr.mxu0 0.0
    %368 = vmatpush1.msra.mxu0 0.0
    %369 = vmatprep.subr.mxu0 0.0
    %370 = vmatpush1.msra.mxu0 0.0
    %371 = vmatprep.subr.mxu0 0.0
    %372 = vmatpush1.msra.mxu0 0.0
    %373 = vmatprep.subr.mxu0 0.0
    %374 = vmatpush1.msra.mxu0 0.0
    %375 = vmatprep.subr.mxu0 0.0
    %376 = vmatpush1.msra.mxu0 0.0
    %377 = vmatprep.subr.mxu0 0.0
    %378 = vmatpush1.msra.mxu0 0.0
    %379 = vmatprep.subr.mxu0 0.0
    %380 = vmatpush1.msra.mxu0 0.0
    %381 = vmatprep.subr.mxu0 0.0
    %382 = vmatpush1.msra.mxu0 0.0
    %383 = vmatprep.subr.mxu0 0.0
    %384 = vmatpush1.msra.mxu0 0.0
    %385 = vmatprep.subr.mxu0 0.0
    %386 = vmatpush1.msra.mxu0 0.0
    %387 = vmatprep.subr.mxu0 0.0
    %388 = vmatpush1.msra.mxu0 0.0
    %389 = vmatprep.subr.mxu0 0.0
    %390 = vmatpush1.msra.mxu0 0.0
    %391 = vmatprep.mubr.f32.mxu0 0.0
    %392 = vmatmul.mubr.f32.gmra.mrb[0].mxu0 %v322
    %v393 = vpop.f32.mrb[0].mxu0
    %v394 = vadd.f32 0.0, %v393
    %v395 = vpop.f32.mrb[0].mxu0
    %396 = vmatprep.mubr.f32.mxu0 0.0
    %397 = vmatmul.mubr.f32.gmra.mrb[0].mxu0 %v325
    %v398 = vpop.f32.mrb[0].mxu0
    %v399 = vadd.f32 0.0, %v398
    %v400 = vpop.f32.mrb[0].mxu0
    %401 = vdwg.mxu0
    %v402 = vld [vmem:[%s0] sm:$0xff]
    %v404 = vsel %vm33, %v402, 0
    %406 = vmatprep.subr.mxu0 0.0
    %407 = vmatpush1.msra.mxu0 %v394
    %408 = vmatprep.subr.mxu0 0.0
    %409 = vmatpush1.msra.mxu0 0.0
    %410 = vmatprep.subr.mxu0 0.0
    %411 = vmatpush1.msra.mxu0 0.0
    %412 = vmatprep.subr.mxu0 0.0
    %413 = vmatpush1.msra.mxu0 0.0
    %414 = vmatprep.subr.mxu0 0.0
    %415 = vmatpush1.msra.mxu0 0.0
    %416 = vmatprep.subr.mxu0 0.0
    %417 = vmatpush1.msra.mxu0 0.0
    %418 = vmatprep.subr.mxu0 0.0
    %419 = vmatpush1.msra.mxu0 0.0
    %420 = vmatprep.subr.mxu0 0.0
    %421 = vmatpush1.msra.mxu0 0.0
    %422 = vmatprep.subr.mxu0 0.0
    %423 = vmatpush1.msra.mxu0 0.0
    %424 = vmatprep.subr.mxu0 0.0
    %425 = vmatpush1.msra.mxu0 0.0
    %426 = vmatprep.subr.mxu0 0.0
    %427 = vmatpush1.msra.mxu0 0.0
    %428 = vmatprep.subr.mxu0 0.0
    %429 = vmatpush1.msra.mxu0 0.0
    %430 = vmatprep.subr.mxu0 0.0
    %431 = vmatpush1.msra.mxu0 0.0
    %432 = vmatprep.subr.mxu0 0.0
    %433 = vmatpush1.msra.mxu0 0.0
    %434 = vmatprep.subr.mxu0 0.0
    %435 = vmatpush1.msra.mxu0 0.0
    %436 = vmatprep.subr.mxu0 0.0
    %437 = vmatpush1.msra.mxu0 0.0
    %438 = vmatprep.subr.mxu0 0.0
    %439 = vmatpush1.msra.mxu0 0.0
    %440 = vmatprep.subr.mxu0 0.0
    %441 = vmatpush1.msra.mxu0 0.0
    %442 = vmatprep.subr.mxu0 0.0
    %443 = vmatpush1.msra.mxu0 0.0
    %444 = vmatprep.subr.mxu0 0.0
    %445 = vmatpush1.msra.mxu0 0.0
    %446 = vmatprep.subr.mxu0 0.0
    %447 = vmatpush1.msra.mxu0 0.0
    %448 = vmatprep.subr.mxu0 0.0
    %449 = vmatpush1.msra.mxu0 0.0
    %450 = vmatprep.subr.mxu0 0.0
    %451 = vmatpush1.msra.mxu0 0.0
    %452 = vmatprep.subr.mxu0 0.0
    %453 = vmatpush1.msra.mxu0 0.0
    %454 = vmatprep.subr.mxu0 0.0
    %455 = vmatpush1.msra.mxu0 0.0
    %456 = vmatprep.subr.mxu0 0.0
    %457 = vmatpush1.msra.mxu0 0.0
    %458 = vmatprep.subr.mxu0 0.0
    %459 = vmatpush1.msra.mxu0 0.0
    %460 = vmatprep.subr.mxu0 0.0
    %461 = vmatpush1.msra.mxu0 0.0
    %462 = vmatprep.subr.mxu0 0.0
    %463 = vmatpush1.msra.mxu0 0.0
    %464 = vmatprep.subr.mxu0 0.0
    %465 = vmatpush1.msra.mxu0 0.0
    %466 = vmatprep.subr.mxu0 0.0
    %467 = vmatpush1.msra.mxu0 0.0
    %468 = vmatprep.subr.mxu0 0.0
    %469 = vmatpush1.msra.mxu0 0.0
    %470 = vmatprep.mubr.f32.mxu0 0.0
    %471 = vmatmul.mubr.f32.gmra.mrb[0].mxu0 %v404
    %v472 = vpop.f32.mrb[0].mxu0
    %v473 = vadd.f32 %v394, %v472
    %v474 = vpop.f32.mrb[0].mxu0
    %475 = vdwg.mxu0
    %v477 = vlaneseq
    %v478 = vshrl.u32 %v477, 7
    %v479 = vsub.s32 0, %v478
    %v480 = vrot.slane %v318, %v479
    %v482 = vadd.f32 %v473, %v480
    %v483 = vmul.f32 %v482, %v38
    %v484 = vmax.f32 %v483, 0.0
    %486 = vrot.lane.b32.xlu0 %v484, 48
    %v487 = vpop.permute.xlu0 %486
    %vm489 = vcmask 523648
    %490 = vst.msk [vmem:[#allocation2] sm:$0xff] %vm489, %v487
    %v491 = vld [vmem:[%s39] sm:$0xff]
    %v493 = vsel %vm33, %v491, 0
    %495 = vmatprep.subr.mxu0 0.0
    %496 = vmatpush1.msra.mxu0 %v399
    %497 = vmatprep.subr.mxu0 0.0
    %498 = vmatpush1.msra.mxu0 0.0
    %499 = vmatprep.subr.mxu0 0.0
    %500 = vmatpush1.msra.mxu0 0.0
    %501 = vmatprep.subr.mxu0 0.0
    %502 = vmatpush1.msra.mxu0 0.0
    %503 = vmatprep.subr.mxu0 0.0
    %504 = vmatpush1.msra.mxu0 0.0
    %505 = vmatprep.subr.mxu0 0.0
    %506 = vmatpush1.msra.mxu0 0.0
    %507 = vmatprep.subr.mxu0 0.0
    %508 = vmatpush1.msra.mxu0 0.0
    %509 = vmatprep.subr.mxu0 0.0
    %510 = vmatpush1.msra.mxu0 0.0
    %511 = vmatprep.subr.mxu0 0.0
    %512 = vmatpush1.msra.mxu0 0.0
    %513 = vmatprep.subr.mxu0 0.0
    %514 = vmatpush1.msra.mxu0 0.0
    %515 = vmatprep.subr.mxu0 0.0
    %516 = vmatpush1.msra.mxu0 0.0
    %517 = vmatprep.subr.mxu0 0.0
    %518 = vmatpush1.msra.mxu0 0.0
    %519 = vmatprep.subr.mxu0 0.0
    %520 = vmatpush1.msra.mxu0 0.0
    %521 = vmatprep.subr.mxu0 0.0
    %522 = vmatpush1.msra.mxu0 0.0
    %523 = vmatprep.subr.mxu0 0.0
    %524 = vmatpush1.msra.mxu0 0.0
    %525 = vmatprep.subr.mxu0 0.0
    %526 = vmatpush1.msra.mxu0 0.0
    %527 = vmatprep.subr.mxu0 0.0
    %528 = vmatpush1.msra.mxu0 0.0
    %529 = vmatprep.subr.mxu0 0.0
    %530 = vmatpush1.msra.mxu0 0.0
    %531 = vmatprep.subr.mxu0 0.0
    %532 = vmatpush1.msra.mxu0 0.0
    %533 = vmatprep.subr.mxu0 0.0
    %534 = vmatpush1.msra.mxu0 0.0
    %535 = vmatprep.subr.mxu0 0.0
    %536 = vmatpush1.msra.mxu0 0.0
    %537 = vmatprep.subr.mxu0 0.0
    %538 = vmatpush1.msra.mxu0 0.0
    %539 = vmatprep.subr.mxu0 0.0
    %540 = vmatpush1.msra.mxu0 0.0
    %541 = vmatprep.subr.mxu0 0.0
    %542 = vmatpush1.msra.mxu0 0.0
    %543 = vmatprep.subr.mxu0 0.0
    %544 = vmatpush1.msra.mxu0 0.0
    %545 = vmatprep.subr.mxu0 0.0
    %546 = vmatpush1.msra.mxu0 0.0
    %547 = vmatprep.subr.mxu0 0.0
    %548 = vmatpush1.msra.mxu0 0.0
    %549 = vmatprep.subr.mxu0 0.0
    %550 = vmatpush1.msra.mxu0 0.0
    %551 = vmatprep.subr.mxu0 0.0
    %552 = vmatpush1.msra.mxu0 0.0
    %553 = vmatprep.subr.mxu0 0.0
    %554 = vmatpush1.msra.mxu0 0.0
    %555 = vmatprep.subr.mxu0 0.0
    %556 = vmatpush1.msra.mxu0 0.0
    %557 = vmatprep.subr.mxu0 0.0
    %558 = vmatpush1.msra.mxu0 0.0
    %559 = vmatprep.mubr.f32.mxu0 0.0
    %560 = vmatmul.mubr.f32.gmra.mrb[0].mxu0 %v493
    %v561 = vpop.f32.mrb[0].mxu0
    %v562 = vadd.f32 %v399, %v561
    %v563 = vpop.f32.mrb[0].mxu0
    %564 = vdwg.mxu0
    %v565 = vadd.f32 %v562, %v480
    %v566 = vmul.f32 %v565, %v45
    %v567 = vmax.f32 %v566, 0.0
    %569 = vrot.lane.b32.xlu0 %v567, 48
    %v570 = vpop.permute.xlu0 %569
    %572 = vst.msk [vmem:[#allocation2 + $0x8] sm:$0xff] %vm489, %v570
    %v573 = vld [vmem:[#allocation2] sm:$0xff]
    %v574 = vld [vmem:[#allocation2 + $0x8] sm:$0xff]
    %577 = vrot.lane.b32.xlu0 %v24, 32
    %v578 = vpop.permute.xlu0 %577
    %579 = vrot.lane.b32.xlu0 %v25, 32
    %v580 = vpop.permute.xlu0 %579
    %v583 = vadd.f32 %v573, %v578
    %v584 = vadd.f32 %v574, %v580
    %v585 = vld [vmem:[%s4] sm:$0xff]
    %v586 = vld [vmem:[%s4 + $0x8] sm:$0xff]
    %v587 = vld [vmem:[%s4 + $0x10] sm:$0xff]
    %v588 = vld [vmem:[%s4 + $0x18] sm:$0xff]
    %v589 = vld [vmem:[%s5] sm:$0x1]
    %v591 = vlaneseq
    %v592 = vshrl.u32 %v591, 7
    %v593 = vsub.s32 0, %v592
    %v594 = vrot.slane %v589, %v593
    %598 = vrot.lane.b32.xlu0 %v583, 96
    %v599 = vpop.permute.xlu0 %598
    %600 = vrot.lane.b32.xlu0 %v584, 96
    %v601 = vpop.permute.xlu0 %600
    %v602 = vsel %vm29, %v599, 0
    %v604 = vsel %vm29, %v601, 0
    %606 = vmatprep.subr.mxu0 0.0
    %607 = vmatpush1.msra.mxu0 %v585
    %608 = vmatprep.subr.mxu0 0.0
    %609 = vmatpush1.msra.mxu0 %v586
    %610 = vmatprep.subr.mxu0 0.0
    %611 = vmatpush1.msra.mxu0 %v587
    %612 = vmatprep.subr.mxu0 0.0
    %613 = vmatpush1.msra.mxu0 %v588
    %614 = vmatprep.subr.mxu0 0.0
    %615 = vmatpush1.msra.mxu0 0.0
    %616 = vmatprep.subr.mxu0 0.0
    %617 = vmatpush1.msra.mxu0 0.0
    %618 = vmatprep.subr.mxu0 0.0
    %619 = vmatpush1.msra.mxu0 0.0
    %620 = vmatprep.subr.mxu0 0.0
    %621 = vmatpush1.msra.mxu0 0.0
    %622 = vmatprep.subr.mxu0 0.0
    %623 = vmatpush1.msra.mxu0 0.0
    %624 = vmatprep.subr.mxu0 0.0
    %625 = vmatpush1.msra.mxu0 0.0
    %626 = vmatprep.subr.mxu0 0.0
    %627 = vmatpush1.msra.mxu0 0.0
    %628 = vmatprep.subr.mxu0 0.0
    %629 = vmatpush1.msra.mxu0 0.0
    %630 = vmatprep.subr.mxu0 0.0
    %631 = vmatpush1.msra.mxu0 0.0
    %632 = vmatprep.subr.mxu0 0.0
    %633 = vmatpush1.msra.mxu0 0.0
    %634 = vmatprep.subr.mxu0 0.0
    %635 = vmatpush1.msra.mxu0 0.0
    %636 = vmatprep.subr.mxu0 0.0
    %637 = vmatpush1.msra.mxu0 0.0
    %638 = vmatprep.subr.mxu0 0.0
    %639 = vmatpush1.msra.mxu0 0.0
    %640 = vmatprep.subr.mxu0 0.0
    %641 = vmatpush1.msra.mxu0 0.0
    %642 = vmatprep.subr.mxu0 0.0
    %643 = vmatpush1.msra.mxu0 0.0
    %644 = vmatprep.subr.mxu0 0.0
    %645 = vmatpush1.msra.mxu0 0.0
    %646 = vmatprep.subr.mxu0 0.0
    %647 = vmatpush1.msra.mxu0 0.0
    %648 = vmatprep.subr.mxu0 0.0
    %649 = vmatpush1.msra.mxu0 0.0
    %650 = vmatprep.subr.mxu0 0.0
    %651 = vmatpush1.msra.mxu0 0.0
    %652 = vmatprep.subr.mxu0 0.0
    %653 = vmatpush1.msra.mxu0 0.0
    %654 = vmatprep.subr.mxu0 0.0
    %655 = vmatpush1.msra.mxu0 0.0
    %656 = vmatprep.subr.mxu0 0.0
    %657 = vmatpush1.msra.mxu0 0.0
    %658 = vmatprep.subr.mxu0 0.0
    %659 = vmatpush1.msra.mxu0 0.0
    %660 = vmatprep.subr.mxu0 0.0
    %661 = vmatpush1.msra.mxu0 0.0
    %662 = vmatprep.subr.mxu0 0.0
    %663 = vmatpush1.msra.mxu0 0.0
    %664 = vmatprep.subr.mxu0 0.0
    %665 = vmatpush1.msra.mxu0 0.0
    %666 = vmatprep.subr.mxu0 0.0
    %667 = vmatpush1.msra.mxu0 0.0
    %668 = vmatprep.subr.mxu0 0.0
    %669 = vmatpush1.msra.mxu0 0.0
    %670 = vmatprep.mubr.f32.mxu0 0.0
    %671 = vmatmul.mubr.f32.gmra.mrb[0].mxu0 %v602
    %v672 = vpop.f32.mrb[0].mxu0
    %v673 = vadd.f32 %v594, %v672
    %v674 = vpop.f32.mrb[0].mxu0
    %675 = vmatprep.mubr.f32.mxu0 0.0
    %676 = vmatmul.mubr.f32.gmra.mrb[0].mxu0 %v604
    %v677 = vpop.f32.mrb[0].mxu0
    %v678 = vadd.f32 %v594, %v677
    %v679 = vpop.f32.mrb[0].mxu0
    %680 = vdwg.mxu0
    %681 = vst.msk [vmem:[#allocation3] sm:$0xff] %vm29, %v673
    %682 = vst.msk [vmem:[#allocation3 + $0x8] sm:$0xff] %vm29, %v678
    // Predicated region
    $region26: #{tpu_custom_call.1} parent=1 // pred_check
      _
    $region27: #{tpu_custom_call.1} parent=1 // pred_check_branch
      %684 = sbr.rel (0) target = $region29
    $region28: #{tpu_custom_call.1} parent=1 // pred_region
      %s686 = ssub.s32 256, 256
      %687 = vsyncadd [#allocation4], %s686
      %s688 = sshll.u32 [#allocation3], 4
      %s689 = int_to_ptr.vmem [resolvable:$true] %s688
      %694 = dma.vmem_to_hbm [thread:$0]  %s689, 256, %s6, [#allocation4], 128, 128, 8
    $region29: #{tpu_custom_call.1} parent=1 // pred_fallthru
      _
    // Predicated region
    $region30: #{tpu_custom_call.1} parent=1 // pred_check
      _
    $region31: #{tpu_custom_call.1} parent=1 // pred_check_branch
      %696 = sbr.rel (0) target = $region33
    $region32: #{tpu_custom_call.1} parent=1 // pred_region
      %697 = dma.done [#allocation4], 256
    $region33: #{tpu_custom_call.1} parent=1 // pred_fallthru
      _
    %698 = vsyncpa [#allocation4], 1

</llo_original>
